<compile_context>
chip_gen: v6e
topology: v6e:2x2x1
jax: 0.10.0
libtpu: 0.0.40
codegen_flags: <defaults>
</compile_context>

<pallas_src>
from typing import Dict, Tuple

import jax
import jax.numpy as jnp
from jax.experimental import pallas as pl
from jax.experimental.pallas import tpu as pltpu


# ----------------------------------------------------------------------------
# Pallas kernel: elementwise flow transform + per-batch logdet
# ----------------------------------------------------------------------------
def _flow_kernel(x_ref, out_ref, logdet_ref):
    # Elementwise transform — identity for the base Flow contract.  A concrete
    # flow would apply its pointwise map here (native dtype, VPU work).
    out_ref[...] = x_ref[...]

    # Per-batch log|det Jacobian|.  For the identity flow it is statically
    # zero, so just initialize the (batch-tile, 1) accumulator once; the
    # logdet block is resident across the feature-tile grid axis, so a real
    # flow would accumulate per-tile contributions into it on every step.
    @pl.when(pl.program_id(1) == 0)
    def _():
        logdet_ref[...] = jnp.zeros_like(logdet_ref)


def _choose_tiles(B: int, D: int) -> Tuple[int, int]:
    """Pick (batch_tile, feature_tile) that satisfy the (8, 128) layout rule
    and keep double-buffered in+out VMEM usage small on all generations."""
    # Lane-dense feature tile: the whole feature dim, or a 2048-wide chunk
    # (multiple of 128) when D is large.
    dt = D if D <= 2048 else 2048
    # Batch tile: the whole batch, or sublane-aligned 256-row chunks.
    bt = B if B <= 256 else 256
    # Worst case (f32): 256*2048*4 = 2 MiB per buffer -> ~8 MiB with
    # double-buffered input + output; well under v7x's 64 MiB VMEM.
    return bt, dt


def _flow_pallas(x_flat: jax.Array) -> Tuple[jax.Array, jax.Array]:
    """x_flat: [B, D] (native dtype) -> (out [B, D], logdet [B, 1] f32)."""
    B, D = x_flat.shape
    bt, dt = _choose_tiles(B, D)
    grid = (pl.cdiv(B, bt), pl.cdiv(D, dt))

    out, logdet = pl.pallas_call(
        _flow_kernel,
        out_shape=(
            jax.ShapeDtypeStruct((B, D), x_flat.dtype),
            jax.ShapeDtypeStruct((B, 1), jnp.float32),
        ),
        grid_spec=pltpu.PrefetchScalarGridSpec(
            num_scalar_prefetch=0,
            grid=grid,
            in_specs=[pl.BlockSpec((bt, dt), lambda i, j: (i, j))],
            out_specs=[
                pl.BlockSpec((bt, dt), lambda i, j: (i, j)),
                pl.BlockSpec((bt, 1), lambda i, j: (i, 0)),
            ],
        ),
        compiler_params=pltpu.CompilerParams(
            # batch axis independent -> parallel (2x on v7x's dual TCs);
            # feature axis carries the resident logdet block -> arbitrary.
            dimension_semantics=("parallel", "arbitrary"),
        ),
    )(x_flat)
    return out, logdet


# ----------------------------------------------------------------------------
# Flow base class (mirrors the PyTorch module exactly)
# ----------------------------------------------------------------------------
class Flow:
    """Normalizing Flow base class."""

    _registry = dict()

    def __init__(self, inverse: bool):
        self.inverse = inverse

    # --- abstract contract --------------------------------------------------
    def forward(self, input: jax.Array, **kwargs) -> Tuple[jax.Array, jax.Array]:
        raise NotImplementedError

    def backward(self, input: jax.Array, **kwargs) -> Tuple[jax.Array, jax.Array]:
        raise NotImplementedError

    def init(self, input: jax.Array, **kwargs) -> Tuple[jax.Array, jax.Array]:
        raise NotImplementedError

    # --- dispatch -----------------------------------------------------------
    def fwdpass(self, x, *h, init=False, init_scale=1.0, **kwargs):
        if self.inverse:
            if init:
                raise RuntimeError('inverse flow shold be initialized with backward pass')
            else:
                return self.backward(x, *h, **kwargs)
        elif init:
            return self.init(x, *h, init_scale=init_scale, **kwargs)
        else:
            return self.forward(x, *h, **kwargs)

    def bwdpass(self, y, *h, init=False, init_scale=1.0, **kwargs):
        if self.inverse:
            if init:
                return self.init(y, *h, init_scale=init_scale, **kwargs)
            else:
                return self.forward(y, *h, **kwargs)
        elif init:
            raise RuntimeError('forward flow should be initialzed with forward pass')
        else:
            return self.backward(y, *h, **kwargs)

    @classmethod
    def register(cls, name: str):
        Flow._registry[name] = cls

    @classmethod
    def by_name(cls, name: str):
        return Flow._registry[name]

    @classmethod
    def from_params(cls, params: Dict):
        raise NotImplementedError


# ----------------------------------------------------------------------------
# Minimal concrete flow realizing the base contract (identity, zero logdet).
# Both directions run the Pallas kernel on the flattened [B, D] layout in the
# input's native dtype.
# ----------------------------------------------------------------------------
class IdentityFlow(Flow):

    def _run(self, x: jax.Array) -> Tuple[jax.Array, jax.Array]:
        batch = x.shape[0]
        x_flat = x.reshape(batch, -1)               # keep native dtype
        out_flat, logdet = _flow_pallas(x_flat)
        out = out_flat.reshape(x.shape)
        return out, logdet.reshape(batch)

    def forward(self, input: jax.Array, **kwargs):
        return self._run(input)

    def backward(self, input: jax.Array, **kwargs):
        return self._run(input)

    def init(self, input: jax.Array, init_scale: float = 1.0, **kwargs):
        return self._run(input)


IdentityFlow.register('identity')


# ----------------------------------------------------------------------------
if __name__ == "__main__":
    key = jax.random.PRNGKey(0)
    # NCHW input, as the PyTorch flows in macow consume: [batch, C, H, W]
    x = jax.random.normal(key, (2, 4, 16, 16), dtype=jnp.float32)

    flow = Flow.by_name('identity')(inverse=False)

    y, logdet = flow.fwdpass(x)
    y = jax.block_until_ready(y)
    logdet = jax.block_until_ready(logdet)

    assert y.shape == x.shape, (y.shape, x.shape)
    assert y.dtype == x.dtype, (y.dtype, x.dtype)
    assert logdet.shape == (x.shape[0],), logdet.shape
    assert logdet.dtype == jnp.float32, logdet.dtype
    assert bool(jnp.allclose(y, x)), "identity flow output mismatch"
    assert bool(jnp.allclose(logdet, jnp.zeros(x.shape[0]))), "logdet mismatch"

    # backward pass through the same dispatch path
    x_back, logdet_b = flow.bwdpass(y)
    jax.block_until_ready(x_back)
    jax.block_until_ready(logdet_b)
    assert bool(jnp.allclose(x_back, x))
    assert bool(jnp.allclose(logdet_b, jnp.zeros(x.shape[0])))

    print("KERNEL_OK")
</pallas_src>

<mosaic_0001>
module attributes {stable_mosaic.version = 11 : i64} {
  func.func @_flow_kernel(%arg0: i32, %arg1: i32, %arg2: memref<2x1024xf32, #tpu.memory_space<vmem>>, %arg3: memref<2x1024xf32, #tpu.memory_space<vmem>>, %arg4: memref<2x1xf32, #tpu.memory_space<vmem>>) attributes {dimension_semantics = [#tpu.dimension_semantics<parallel>, #tpu.dimension_semantics<arbitrary>], iteration_bounds = array<i64: 1, 1>, scalar_prefetch = 0 : i64, scratch_operands = 0 : i64, tpu.core_type = #tpu.core_type<tc>, window_params = [{transform_indices = @transform_0, window_bounds = array<i64: 2, 1024>}, {transform_indices = @transform_1, window_bounds = array<i64: 2, 1024>}, {transform_indices = @transform_2, window_bounds = array<i64: 2, 1>}]} {
    %c0 = arith.constant 0 : index
    %c0_0 = arith.constant 0 : index
    %0 = vector.load %arg2[%c0, %c0_0] : memref<2x1024xf32, #tpu.memory_space<vmem>>, vector<2x1024xf32>
    %c0_1 = arith.constant 0 : index
    %c0_2 = arith.constant 0 : index
    %1 = vector.load %arg3[%c0_1, %c0_2] : memref<2x1024xf32, #tpu.memory_space<vmem>>, vector<2x1024xf32>
    tpu.vector_store %arg3[%c0_1, %c0_2], %0 {strides = array<i32>} : memref<2x1024xf32, #tpu.memory_space<vmem>>, vector<2x1024xf32>,
    %c0_i32 = arith.constant 0 : i32
    %2 = arith.cmpi eq, %arg1, %c0_i32 : i32
    %3 = arith.extui %2 : i1 to i32
    %c0_i32_3 = arith.constant 0 : i32
    %4 = arith.cmpi ne, %3, %c0_i32_3 : i32
    scf.if %4 {
      %cst = arith.constant 0.000000e+00 : f32
      %5 = vector.broadcast %cst : f32 to vector<2x1xf32>
      %c0_4 = arith.constant 0 : index
      %c0_5 = arith.constant 0 : index
      %6 = vector.load %arg4[%c0_4, %c0_5] : memref<2x1xf32, #tpu.memory_space<vmem>>, vector<2x1xf32>
      tpu.vector_store %arg4[%c0_4, %c0_5], %5 {strides = array<i32>} : memref<2x1xf32, #tpu.memory_space<vmem>>, vector<2x1xf32>,
    } else {
    }
    return
  }
  func.func @transform_0(%arg0: i32, %arg1: i32) -> (i32, i32) {
    %c0_i32 = arith.constant 0 : i32
    return %arg0, %arg1 : i32, i32
  }
  func.func @transform_1(%arg0: i32, %arg1: i32) -> (i32, i32) {
    %c0_i32 = arith.constant 0 : i32
    return %arg0, %arg1 : i32, i32
  }
  func.func @transform_2(%arg0: i32, %arg1: i32) -> (i32, i32) {
    %c0_i32 = arith.constant 0 : i32
    %c0_i32_0 = arith.constant 0 : i32
    return %arg0, %c0_i32 : i32, i32
  }
}

</mosaic_0001>

<llo_original>
// kernel: tpu_custom_call.1
$region0: #{tpu_custom_call.1}
  #allocation0 [shape = 'u32[]', space=smem, size = 0x4, offset = 0x4, fixed_abs, tag = 'smem constant byte address 0x4 - core index']
  #allocation1 [shape = 'u32[144,128]{1,0:T(1,128)}', space=vmem, size = 0x12000, scoped, tag = 'internal scratch']
  %s0 = inlined_call_operand.hbm [shape: f32[2,1024], index: 0, kind: input, shape index: {}]
  %s1 = inlined_call_operand.hbm [shape: f32[2,1024], index: 1, kind: output, shape index: {0}]
  %s2 = inlined_call_operand.vmem [shape: f32[2,1], index: 2, kind: output, shape index: {1}]
  %3 = xla_tuple %s1, %s2
  %s4 = sld [smem:[#allocation0]]
  $region30: #{tpu_custom_call.1} parent=0
    _
  %s6 = ssub.s32 1, %s4
  %s7 = scalar_select 0, %s6, %s4
  $region1: #{tpu_custom_call.1} parent=0
    #allocation2 [shape = 'u8[8192]{0}', space=vmem, size = 0x2000, scoped, tag = 'input window, operand 0, single buffered']
    #allocation3 [shape = 's32[1]{0}', space=sflag, size = 0x4, scoped, tag = 'scoped memory for tpu_custom_call.1']
    #allocation4 [shape = 's32[1]{0}', space=sflag, size = 0x4, scoped, tag = 'scoped memory for tpu_custom_call.1']
    #allocation5 [shape = 'u8[8192]{0}', space=vmem, size = 0x2000, scoped, tag = 'output window, operand 0, single buffered']
    %8 = vsyncpa [#allocation3], 0
    %9 = vsyncpa [#allocation4], 0
    // Predicated region
    $region2: #{tpu_custom_call.1} parent=1 // pred_check
      _
    $region3: #{tpu_custom_call.1} parent=1 // pred_check_branch
      %11 = sbr.rel (0) target = $region5
    $region4: #{tpu_custom_call.1} parent=1 // pred_region
      %s13 = ssub.s32 256, 256
      %14 = vsyncadd [#allocation3], %s13
      %s16 = sshll.u32 [#allocation2], 4
      %s17 = int_to_ptr.vmem [resolvable:$true] %s16
      %19 = dma.hbm_to_vmem [thread:$0]  %s0, 256, %s17, [#allocation3]
    $region5: #{tpu_custom_call.1} parent=1 // pred_fallthru
      _
    // Predicated region
    $region6: #{tpu_custom_call.1} parent=1 // pred_check
      _
    $region7: #{tpu_custom_call.1} parent=1 // pred_check_branch
      %21 = sbr.rel (0) target = $region9
    $region8: #{tpu_custom_call.1} parent=1 // pred_region
      %22 = dma.done [#allocation3], 256
    $region9: #{tpu_custom_call.1} parent=1 // pred_fallthru
      _
    %v23 = vld [vmem:[#allocation2] sm:$0xff]
    %v24 = vld [vmem:[#allocation2 + $0x8] sm:$0xff]
    %25 = vst [vmem:[#allocation5] sm:$0xff] %v23
    %26 = vst [vmem:[#allocation5 + $0x8] sm:$0xff] %v24
    %p27 = scmp.eq.s32.totalorder 0, 0
    // Predicated region
    $region10: #{tpu_custom_call.1} parent=1 // pred_check
      %p28 = pneg %p27
    $region11: #{tpu_custom_call.1} parent=1 // pred_check_branch
      %30 = sbr.rel (%p28) target = $region13
    $region12: #{tpu_custom_call.1} parent=1 // pred_region
      %vm31 = vcmask 1024
      %32 = vst.msk [vmem:[%s2] sm:$0x3] %vm31, 0.0
    $region13: #{tpu_custom_call.1} parent=1 // pred_fallthru
      _
    // Predicated region
    $region14: #{tpu_custom_call.1} parent=1 // pred_check
      _
    $region15: #{tpu_custom_call.1} parent=1 // pred_check_branch
      %34 = sbr.rel (0) target = $region17
    $region16: #{tpu_custom_call.1} parent=1 // pred_region
      %s36 = ssub.s32 256, 256
      %37 = vsyncadd [#allocation4], %s36
      %s39 = sshll.u32 [#allocation5], 4
      %s40 = int_to_ptr.vmem [resolvable:$true] %s39
      %42 = dma.vmem_to_hbm [thread:$0]  %s40, 256, %s1, [#allocation4]
    $region17: #{tpu_custom_call.1} parent=1 // pred_fallthru
      _
    // Predicated region
    $region18: #{tpu_custom_call.1} parent=1 // pred_check
      _
    $region19: #{tpu_custom_call.1} parent=1 // pred_check_branch
      %44 = sbr.rel (0) target = $region21
    $region20: #{tpu_custom_call.1} parent=1 // pred_region
      _
    $region21: #{tpu_custom_call.1} parent=1 // pred_fallthru
      _
    // Predicated region
    $region22: #{tpu_custom_call.1} parent=1 // pred_check
      _
    $region23: #{tpu_custom_call.1} parent=1 // pred_check_branch
      %46 = sbr.rel (0) target = $region25
    $region24: #{tpu_custom_call.1} parent=1 // pred_region
      %47 = dma.done [#allocation4], 256
    $region25: #{tpu_custom_call.1} parent=1 // pred_fallthru
      _
    // Predicated region
    $region26: #{tpu_custom_call.1} parent=1 // pred_check
      _
    $region27: #{tpu_custom_call.1} parent=1 // pred_check_branch
      %49 = sbr.rel (0) target = $region29
    $region28: #{tpu_custom_call.1} parent=1 // pred_region
      _
    $region29: #{tpu_custom_call.1} parent=1 // pred_fallthru
      _
    %50 = vsyncpa [#allocation3], 1
    %51 = vsyncpa [#allocation4], 1

</llo_original>
